<compile_context>
chip_gen: v5e
topology: v5e:2x2
jax: 0.10.0
libtpu: 0.0.40
codegen_flags: <defaults>
</compile_context>

<pallas_src>
import functools

import jax
import jax.numpy as jnp
from jax.experimental import pallas as pl
from jax.experimental.pallas import tpu as pltpu

_PI = 3.14159  # the PyTorch module uses this truncated pi


def _round_up(x, m):
    return (x + m - 1) // m * m


def _gaussian_mlp_kernel(x_ref, mean_ref, w1_ref, b1_ref, w2_ref, b2_ref, o_ref,
                         *, neg_half_inv_var):
    # Per edge-tile refs:
    #   x_ref    (T, 1)  f32  -- per-edge scalar  mul*dist + bias
    #   mean_ref (1, K)  f32  -- gaussian centres (VMEM-resident)
    #   w1_ref   (K, K)  bf16 -- layer1 weight [in, out], gaussian prefactor folded in
    #   b1_ref   (1, K)  f32
    #   w2_ref   (K, P)  bf16 -- layer2 weight [in, out]
    #   b2_ref   (1, P)  f32
    #   o_ref    (T, P)  out dtype (bf16 by default)
    x = x_ref[...]                                   # (T, 1) f32
    d = x - mean_ref[...]                            # (T, K) broadcast over lanes
    # Gaussian basis with constants hoisted: 3 VALU + 1 EUP per element.
    # (prefactor folded into w1; -0.5/std^2 is a single fused scalar)
    g = jnp.exp(d * d * neg_half_inv_var)

    h = jnp.dot(g.astype(jnp.bfloat16), w1_ref[...],
                preferred_element_type=jnp.float32) + b1_ref[...]
    # TODO(synk): torch F.gelu defaults to the exact erf form; the tanh approximation
    # is used here (abs delta < 1e-3, covered by the test tolerance).
    h = jax.nn.gelu(h, approximate=True)

    o = jnp.dot(h.astype(jnp.bfloat16), w2_ref[...],
                preferred_element_type=jnp.float32) + b2_ref[...]
    o_ref[...] = o.astype(o_ref.dtype)


def _choose_tile(n, max_tile):
    """Largest useful row tile: amortize per-step overhead, keep grid >= 2 for v7x."""
    if n >= 2 * max_tile:
        return max_tile
    return max(8, _round_up(pl.cdiv(n, 2), 8))     # sublane-aligned half split


def gaussian_mlp_pallas(x_edge, params, *, max_tile=2048, out_dtype=jnp.bfloat16):
    """x_edge: [N, 1] per-edge scalar -> [N, pair_dim] edge features."""
    N = x_edge.shape[0]
    K = params.num_kernel
    P = params.pair_dim

    tile = _choose_tile(N, max_tile)
    grid_n = pl.cdiv(N, tile)
    Np = grid_n * tile
    if Np != N:
        # < tile rows of a [*,1] f32 stream; padded rows (x=0) stay finite and are
        # sliced off below.
        x_edge = jnp.pad(x_edge, ((0, Np - N), (0, 0)))

    kernel = functools.partial(_gaussian_mlp_kernel,
                               neg_half_inv_var=params.neg_half_inv_var)

    out_bytes = jnp.dtype(out_dtype).itemsize
    cost = pl.CostEstimate(
        flops=2 * Np * K * (K + P) + 8 * Np * K,
        transcendentals=2 * Np * K,                       # exp + tanh(gelu)
        bytes_accessed=Np * 4 + Np * P * out_bytes + 2 * K * (K + P) + 4 * (2 * K + P),
    )

    out = pl.pallas_call(
        kernel,
        out_shape=jax.ShapeDtypeStruct((Np, P), out_dtype),
        grid_spec=pltpu.PrefetchScalarGridSpec(
            num_scalar_prefetch=0,
            grid=(grid_n,),
            in_specs=[
                pl.BlockSpec((tile, 1), lambda i: (i, 0)),   # per-edge scalar stream
                pl.BlockSpec((1, K), lambda i: (0, 0)),      # gaussian means (resident)
                pl.BlockSpec((K, K), lambda i: (0, 0)),      # w1 bf16 (resident)
                pl.BlockSpec((1, K), lambda i: (0, 0)),      # b1 f32 (resident)
                pl.BlockSpec((K, P), lambda i: (0, 0)),      # w2 bf16 (resident)
                pl.BlockSpec((1, P), lambda i: (0, 0)),      # b2 f32 (resident)
            ],
            out_specs=pl.BlockSpec((tile, P), lambda i: (i, 0)),
        ),
        compiler_params=pltpu.CompilerParams(
            dimension_semantics=("parallel",),
            # tile=2048 footprint ~8 MiB; 32 MiB lifts v5e's 16 MiB scoped default
            # and stays within v7x's 64 MiB physical VMEM.
            vmem_limit_bytes=32 * 1024 * 1024,
        ),
        cost_estimate=cost,
    )(x_edge, params.mean_k, params.w1_k, params.b1_k, params.w2_k, params.b2_k)

    return out[:N] if Np != N else out


class SE3InvariantKernelParams:
    """Deterministic synthetic parameters matching the PyTorch module's shapes."""

    def __init__(self, key, pair_dim, num_pair, num_kernel,
                 std_width=1.0, start=0.0, stop=9.0):
        K = num_kernel
        self.num_kernel = K
        self.pair_dim = pair_dim

        mean = jnp.linspace(start, stop, K, dtype=jnp.float32)
        self.mean = mean
        self.std = float(std_width * (mean[1] - mean[0]))
        self.prefactor = float(1.0 / (((2.0 * _PI) ** 0.5) * self.std))
        self.neg_half_inv_var = float(-0.5 / (self.std * self.std))

        ks = jax.random.split(key, 6)
        # GaussianKernel embeddings: [num_pair, 1], padding row 0 zeroed.
        self.mul_table = 0.5 + 0.05 * jax.random.normal(ks[0], (num_pair, 1), jnp.float32)
        self.bias_table = 0.05 * jax.random.normal(ks[1], (num_pair, 1), jnp.float32)
        self.mul_table = self.mul_table.at[0].set(0.0)
        self.bias_table = self.bias_table.at[0].set(0.0)

        # NonLinear: layer1 K->K, layer2 K->pair_dim (PyTorch-style [out, in] weights).
        sc = 0.05
        self.w1 = sc * jax.random.normal(ks[2], (K, K), jnp.float32)
        self.b1 = 0.01 * jax.random.normal(ks[3], (K,), jnp.float32)
        self.w2 = sc * jax.random.normal(ks[4], (pair_dim, K), jnp.float32)
        self.b2 = 0.01 * jax.random.normal(ks[5], (pair_dim,), jnp.float32)

        # Kernel-friendly layouts: [in, out] bf16 weights (MXU), 2-D f32 biases/means.
        # The gaussian prefactor 1/(sqrt(2*pi)*std) is folded into w1's columns so the
        # kernel never multiplies by it per element.
        self.w1_k = (self.prefactor * self.w1.T).astype(jnp.bfloat16)
        self.w2_k = self.w2.T.astype(jnp.bfloat16)
        self.b1_k = self.b1.reshape(1, K)
        self.b2_k = self.b2.reshape(1, pair_dim)
        self.mean_k = mean.reshape(1, K)


def se3_invariant_kernel_forward(params, dist, node_type_edge, *,
                                 max_tile=2048, out_dtype=jnp.bfloat16):
    """dist: [B, L, L] f32; node_type_edge: [B, L, L, 2] int32 -> [B, L, L, pair_dim]."""
    B, L1, L2 = dist.shape
    # Glue: two scalar embedding lookups per edge + per-edge affine (XLA fuses this
    # into one pass over dist/node_type_edge; only a [N,1] scalar stream feeds the
    # Pallas kernel).
    mul = jnp.abs(params.mul_table[node_type_edge]).sum(-2)[..., 0]    # [B, L, L]
    bias = params.bias_table[node_type_edge].sum(-2)[..., 0]          # [B, L, L]
    x_edge = (mul * dist + bias).reshape(-1, 1)                       # [N, 1]

    out = gaussian_mlp_pallas(x_edge, params, max_tile=max_tile,
                              out_dtype=out_dtype)                    # [N, P]
    return out.reshape(B, L1, L2, params.pair_dim)


def se3_invariant_kernel_reference(params, dist, node_type_edge):
    """Pure-JAX f32 reference mirroring the PyTorch forward exactly."""
    mul = jnp.abs(params.mul_table[node_type_edge]).sum(-2)           # [B, L, L, 1]
    bias = params.bias_table[node_type_edge].sum(-2)                  # [B, L, L, 1]
    x = mul * dist[..., None] + bias                                  # [B, L, L, 1]
    x = jnp.broadcast_to(x, x.shape[:-1] + (params.num_kernel,))      # expand to K
    a = (2.0 * _PI) ** 0.5
    g = jnp.exp(-0.5 * ((x - params.mean) / params.std) ** 2) / (a * params.std)
    h = g @ params.w1.T + params.b1
    h = jax.nn.gelu(h, approximate=False)     # torch F.gelu default (exact erf)
    return h @ params.w2.T + params.b2


if __name__ == "__main__":
    # Small, module-consistent shapes: pair features over an L x L distance map.
    B, L = 2, 16
    pair_dim, num_pair, num_kernel = 128, 64, 128

    key = jax.random.PRNGKey(0)
    kp, kd, kt = jax.random.split(key, 3)

    params = SE3InvariantKernelParams(kp, pair_dim, num_pair, num_kernel)

    dist = jax.random.uniform(kd, (B, L, L), jnp.float32, 0.0, 9.0)
    node_type_edge = jax.random.randint(kt, (B, L, L, 2), 0, num_pair, dtype=jnp.int32)

    out = se3_invariant_kernel_forward(params, dist, node_type_edge)
    out = jax.block_until_ready(out)

    ref = se3_invariant_kernel_reference(params, dist, node_type_edge)
    assert out.shape == (B, L, L, pair_dim)
    # Tolerance covers bf16 MXU operands (f32 accumulation), bf16 output store, and
    # the tanh-gelu approximation.
    err = jnp.max(jnp.abs(out.astype(jnp.float32) - ref))
    assert jnp.allclose(out.astype(jnp.float32), ref, atol=2e-2, rtol=2e-2), \
        f"mismatch vs reference: max abs err {float(err)}"
    print("KERNEL_OK")
</pallas_src>

<mosaic_0001>
module attributes {stable_mosaic.version = 11 : i64} {
  func.func @_gaussian_mlp_kernel(%arg0: i32, %arg1: memref<256x1xf32, #tpu.memory_space<vmem>>, %arg2: memref<1x128xf32, #tpu.memory_space<vmem>>, %arg3: memref<128x128xbf16, #tpu.memory_space<vmem>>, %arg4: memref<1x128xf32, #tpu.memory_space<vmem>>, %arg5: memref<128x128xbf16, #tpu.memory_space<vmem>>, %arg6: memref<1x128xf32, #tpu.memory_space<vmem>>, %arg7: memref<256x128xbf16, #tpu.memory_space<vmem>>) attributes {dimension_semantics = [#tpu.dimension_semantics<parallel>], iteration_bounds = array<i64: 2>, scalar_prefetch = 0 : i64, scratch_operands = 0 : i64, tpu.core_type = #tpu.core_type<tc>, window_params = [{transform_indices = @transform_0, window_bounds = array<i64: 256, 1>}, {pipeline_mode = #tpu.pipeline_mode<synchronous>, transform_indices = @transform_1, window_bounds = array<i64: 1, 128>}, {pipeline_mode = #tpu.pipeline_mode<synchronous>, transform_indices = @transform_2, window_bounds = array<i64: 128, 128>}, {pipeline_mode = #tpu.pipeline_mode<synchronous>, transform_indices = @transform_3, window_bounds = array<i64: 1, 128>}, {pipeline_mode = #tpu.pipeline_mode<synchronous>, transform_indices = @transform_4, window_bounds = array<i64: 128, 128>}, {pipeline_mode = #tpu.pipeline_mode<synchronous>, transform_indices = @transform_5, window_bounds = array<i64: 1, 128>}, {transform_indices = @transform_6, window_bounds = array<i64: 256, 128>}]} {
    %c0 = arith.constant 0 : index
    %c0_0 = arith.constant 0 : index
    %0 = vector.load %arg1[%c0, %c0_0] : memref<256x1xf32, #tpu.memory_space<vmem>>, vector<256x1xf32>
    %c0_1 = arith.constant 0 : index
    %c0_2 = arith.constant 0 : index
    %1 = vector.load %arg2[%c0_1, %c0_2] : memref<1x128xf32, #tpu.memory_space<vmem>>, vector<1x128xf32>
    %2 = vector.broadcast %0 : vector<256x1xf32> to vector<256x128xf32>
    %3 = vector.broadcast %1 : vector<1x128xf32> to vector<256x128xf32>
    %4 = arith.subf %2, %3 : vector<256x128xf32>
    %5 = arith.mulf %4, %4 : vector<256x128xf32>
    %cst = arith.constant -99.561737 : f32
    %6 = vector.broadcast %cst : f32 to vector<256x128xf32>
    %7 = arith.mulf %5, %6 : vector<256x128xf32>
    %8 = math.exp %7 : vector<256x128xf32>
    %9 = arith.truncf %8 : vector<256x128xf32> to vector<256x128xbf16>
    %c0_3 = arith.constant 0 : index
    %c0_4 = arith.constant 0 : index
    %10 = vector.load %arg3[%c0_3, %c0_4] : memref<128x128xbf16, #tpu.memory_space<vmem>>, vector<128x128xbf16>
    %cst_5 = arith.constant dense<0.000000e+00> : vector<256x128xf32>
    %11 = tpu.matmul %9, %10, %cst_5 {dimension_numbers = #tpu.dot_dimension_numbers<[1], [0], [0], [1], [0, 0, 1, 1], [], []>} : vector<256x128xbf16>, vector<128x128xbf16>, vector<256x128xf32> -> vector<256x128xf32>
    %c0_6 = arith.constant 0 : index
    %c0_7 = arith.constant 0 : index
    %12 = vector.load %arg4[%c0_6, %c0_7] : memref<1x128xf32, #tpu.memory_space<vmem>>, vector<1x128xf32>
    %13 = vector.broadcast %12 : vector<1x128xf32> to vector<256x128xf32>
    %14 = arith.addf %11, %13 : vector<256x128xf32>
    %15 = arith.mulf %14, %14 : vector<256x128xf32>
    %16 = arith.mulf %14, %15 : vector<256x128xf32>
    %cst_8 = arith.constant 4.471500e-02 : f32
    %17 = vector.broadcast %cst_8 : f32 to vector<256x128xf32>
    %18 = arith.mulf %17, %16 : vector<256x128xf32>
    %19 = arith.addf %14, %18 : vector<256x128xf32>
    %cst_9 = arith.constant 0.797884583 : f32
    %20 = vector.broadcast %cst_9 : f32 to vector<256x128xf32>
    %21 = arith.mulf %20, %19 : vector<256x128xf32>
    %22 = math.tanh %21 : vector<256x128xf32>
    %cst_10 = arith.constant 1.000000e+00 : f32
    %23 = vector.broadcast %cst_10 : f32 to vector<256x128xf32>
    %24 = arith.addf %23, %22 : vector<256x128xf32>
    %cst_11 = arith.constant 5.000000e-01 : f32
    %25 = vector.broadcast %cst_11 : f32 to vector<256x128xf32>
    %26 = arith.mulf %25, %24 : vector<256x128xf32>
    %27 = arith.mulf %14, %26 : vector<256x128xf32>
    %28 = arith.truncf %27 : vector<256x128xf32> to vector<256x128xbf16>
    %c0_12 = arith.constant 0 : index
    %c0_13 = arith.constant 0 : index
    %29 = vector.load %arg5[%c0_12, %c0_13] : memref<128x128xbf16, #tpu.memory_space<vmem>>, vector<128x128xbf16>
    %cst_14 = arith.constant dense<0.000000e+00> : vector<256x128xf32>
    %30 = tpu.matmul %28, %29, %cst_14 {dimension_numbers = #tpu.dot_dimension_numbers<[1], [0], [0], [1], [0, 0, 1, 1], [], []>} : vector<256x128xbf16>, vector<128x128xbf16>, vector<256x128xf32> -> vector<256x128xf32>
    %c0_15 = arith.constant 0 : index
    %c0_16 = arith.constant 0 : index
    %31 = vector.load %arg6[%c0_15, %c0_16] : memref<1x128xf32, #tpu.memory_space<vmem>>, vector<1x128xf32>
    %32 = vector.broadcast %31 : vector<1x128xf32> to vector<256x128xf32>
    %33 = arith.addf %30, %32 : vector<256x128xf32>
    %34 = arith.truncf %33 : vector<256x128xf32> to vector<256x128xbf16>
    %c0_17 = arith.constant 0 : index
    %c0_18 = arith.constant 0 : index
    %35 = vector.load %arg7[%c0_17, %c0_18] : memref<256x128xbf16, #tpu.memory_space<vmem>>, vector<256x128xbf16>
    tpu.vector_store %arg7[%c0_17, %c0_18], %34 {strides = array<i32>} : memref<256x128xbf16, #tpu.memory_space<vmem>>, vector<256x128xbf16>,
    return
  }
  func.func @transform_0(%arg0: i32) -> (i32, i32) {
    %c0_i32 = arith.constant 0 : i32
    %c0_i32_0 = arith.constant 0 : i32
    return %arg0, %c0_i32 : i32, i32
  }
  func.func @transform_1(%arg0: i32) -> (i32, i32) {
    %c0_i32 = arith.constant 0 : i32
    %c0_i32_0 = arith.constant 0 : i32
    %c0_i32_1 = arith.constant 0 : i32
    return %c0_i32, %c0_i32_0 : i32, i32
  }
  func.func @transform_2(%arg0: i32) -> (i32, i32) {
    %c0_i32 = arith.constant 0 : i32
    %c0_i32_0 = arith.constant 0 : i32
    %c0_i32_1 = arith.constant 0 : i32
    return %c0_i32, %c0_i32_0 : i32, i32
  }
  func.func @transform_3(%arg0: i32) -> (i32, i32) {
    %c0_i32 = arith.constant 0 : i32
    %c0_i32_0 = arith.constant 0 : i32
    %c0_i32_1 = arith.constant 0 : i32
    return %c0_i32, %c0_i32_0 : i32, i32
  }
  func.func @transform_4(%arg0: i32) -> (i32, i32) {
    %c0_i32 = arith.constant 0 : i32
    %c0_i32_0 = arith.constant 0 : i32
    %c0_i32_1 = arith.constant 0 : i32
    return %c0_i32, %c0_i32_0 : i32, i32
  }
  func.func @transform_5(%arg0: i32) -> (i32, i32) {
    %c0_i32 = arith.constant 0 : i32
    %c0_i32_0 = arith.constant 0 : i32
    %c0_i32_1 = arith.constant 0 : i32
    return %c0_i32, %c0_i32_0 : i32, i32
  }
  func.func @transform_6(%arg0: i32) -> (i32, i32) {
    %c0_i32 = arith.constant 0 : i32
    %c0_i32_0 = arith.constant 0 : i32
    return %arg0, %c0_i32 : i32, i32
  }
}

</mosaic_0001>

<llo_original>
// kernel: tpu_custom_call.1
$region0: #{tpu_custom_call.1}
  #allocation0 [shape = 'u32[]', space=smem, size = 0x4, offset = 0x4, fixed_abs, tag = 'smem constant byte address 0x4 - core index']
  #allocation1 [shape = 'u32[72,128]{1,0:T(1,128)}', space=vmem, size = 0x9000, scoped, tag = 'internal scratch']
  %s0 = inlined_call_operand.vmem [shape: f32[512,1], index: 0, kind: input, shape index: {}]
  %s1 = inlined_call_operand.vmem [shape: f32[1,128], index: 1, kind: input, shape index: {}]
  %s2 = inlined_call_operand.vmem [shape: bf16[128,128], index: 2, kind: input, shape index: {}]
  %s3 = inlined_call_operand.vmem [shape: f32[1,128], index: 3, kind: input, shape index: {}]
  %s4 = inlined_call_operand.vmem [shape: bf16[128,128], index: 4, kind: input, shape index: {}]
  %s5 = inlined_call_operand.vmem [shape: f32[1,128], index: 5, kind: input, shape index: {}]
  %s6 = inlined_call_operand.hbm [shape: bf16[512,128], index: 6, kind: output, shape index: {}]
  %s7 = sld [smem:[#allocation0]]
  $region57: #{tpu_custom_call.1} parent=0
    _
  %s9 = ssub.s32 1, %s7
  %s10 = scalar_select 0, %s9, %s7
  $region1: #{tpu_custom_call.1} parent=0
    #allocation2 [shape = 'u8[131072]{0}', space=vmem, size = 0x20000, scoped, tag = 'output window, operand 0']
    #allocation3 [shape = 's32[2]{0}', space=sflag, size = 0x8, scoped, tag = 'scoped memory for tpu_custom_call.1']
    %11 = vsyncpa [#allocation3], 0
    %s12 = scalar_lea.sflag [#allocation3], 1
    %13 = vsyncpa %s12, 0
    loop: start=0, step=1, limit=4
    $region2: #{tpu_custom_call.1} parent=1 // loop_pre_header
      _
    $region3: #{tpu_custom_call.1} parent=1 // loop_header
      %s15 = sphi 0, %s19
      %p16 = scmp.ge.s32.totalorder %s15, 4
      %s25 = sphi 0, %s27
      %s28 = sphi 0, %s25
      %s29 = sphi 0, %s28
      %s45 = sphi 0, %s29
      %s49 = sphi 0, %s49
      %s51 = sphi 0, %s49
      %s52 = sphi 0, %s51
      %s66 = sphi 0, %s52
      %s70 = sphi 0, %s70
      %s72 = sphi 0, %s70
      %s73 = sphi 0, %s72
      %s87 = sphi 0, %s73
      %s91 = sphi 0, %s91
      %s93 = sphi 0, %s91
      %s94 = sphi 0, %s93
      %s108 = sphi 0, %s94
      %s112 = sphi 0, %s112
      %s114 = sphi 0, %s112
      %s115 = sphi 0, %s114
      %s129 = sphi 0, %s115
      %s133 = sphi 0, %s133
      %s135 = sphi 0, %s133
      %s136 = sphi 0, %s135
      %s150 = sphi 0, %s136
      %s156 = sphi 0, %s158
      %s159 = sphi 0, %s156
      %s160 = sphi 0, %s159
      %s176 = sphi 0, %s160
    $region4: #{tpu_custom_call.1} parent=1 // loop_header_branch
      %18 = sbr.rel (%p16) target = $region8
    $region5: #{tpu_custom_call.1} parent=1 // loop_body
      %s20 = ssub.s32 %s15, 1
      %s21 = ssub.s32 %s15, 2
      %s22 = sadd.s32 %s15, 1
      %s23 = ssub.s32 %s15, %s22
      %p24 = scmp.eq.s32.totalorder %s23, 0
      %s26 = sadd.s32 %s25, 1
      %s27 = scalar_select %p24, %s25, %s26
      %p30 = pneg %p24
      %p31 = scmp.eq.s32.totalorder %s15, 1
      %p32 = por %p30, %p31
      %p33 = scmp.ne.s32.totalorder %s25, %s28
      %p34 = scmp.eq.s32.totalorder %s15, 0
      %p35 = por %p33, %p34
      %p36 = scmp.ne.s32.totalorder %s25, %s28
      %p37 = scmp.eq.s32.totalorder %s20, 1
      %p38 = por %p36, %p37
      %p39 = scmp.ne.s32.totalorder %s28, %s29
      %p40 = scmp.eq.s32.totalorder %s20, 0
      %p41 = por %p39, %p40
      %p42 = scmp.ne.s32.totalorder %s28, %s29
      %p43 = scmp.eq.s32.totalorder %s21, 1
      %p44 = por %p42, %p43
      %p46 = scmp.ne.s32.totalorder %s29, %s45
      %p47 = scmp.eq.s32.totalorder %s21, 0
      %p48 = por %p46, %p47
      %s50 = sadd.s32 %s49, 1
      %p53 = scmp.eq.s32.totalorder %s15, 1
      %p54 = scmp.ne.s32.totalorder %s49, %s51
      %p55 = scmp.eq.s32.totalorder %s15, 0
      %p56 = por %p54, %p55
      %p57 = scmp.ne.s32.totalorder %s49, %s51
      %p58 = scmp.eq.s32.totalorder %s20, 1
      %p59 = por %p57, %p58
      %p60 = scmp.ne.s32.totalorder %s51, %s52
      %p61 = scmp.eq.s32.totalorder %s20, 0
      %p62 = por %p60, %p61
      %p63 = scmp.ne.s32.totalorder %s51, %s52
      %p64 = scmp.eq.s32.totalorder %s21, 1
      %p65 = por %p63, %p64
      %p67 = scmp.ne.s32.totalorder %s52, %s66
      %p68 = scmp.eq.s32.totalorder %s21, 0
      %p69 = por %p67, %p68
      %s71 = sadd.s32 %s70, 1
      %p74 = scmp.eq.s32.totalorder %s15, 1
      %p75 = scmp.ne.s32.totalorder %s70, %s72
      %p76 = scmp.eq.s32.totalorder %s15, 0
      %p77 = por %p75, %p76
      %p78 = scmp.ne.s32.totalorder %s70, %s72
      %p79 = scmp.eq.s32.totalorder %s20, 1
      %p80 = por %p78, %p79
      %p81 = scmp.ne.s32.totalorder %s72, %s73
      %p82 = scmp.eq.s32.totalorder %s20, 0
      %p83 = por %p81, %p82
      %p84 = scmp.ne.s32.totalorder %s72, %s73
      %p85 = scmp.eq.s32.totalorder %s21, 1
      %p86 = por %p84, %p85
      %p88 = scmp.ne.s32.totalorder %s73, %s87
      %p89 = scmp.eq.s32.totalorder %s21, 0
      %p90 = por %p88, %p89
      %s92 = sadd.s32 %s91, 1
      %p95 = scmp.eq.s32.totalorder %s15, 1
      %p96 = scmp.ne.s32.totalorder %s91, %s93
      %p97 = scmp.eq.s32.totalorder %s15, 0
      %p98 = por %p96, %p97
      %p99 = scmp.ne.s32.totalorder %s91, %s93
      %p100 = scmp.eq.s32.totalorder %s20, 1
      %p101 = por %p99, %p100
      %p102 = scmp.ne.s32.totalorder %s93, %s94
      %p103 = scmp.eq.s32.totalorder %s20, 0
      %p104 = por %p102, %p103
      %p105 = scmp.ne.s32.totalorder %s93, %s94
      %p106 = scmp.eq.s32.totalorder %s21, 1
      %p107 = por %p105, %p106
      %p109 = scmp.ne.s32.totalorder %s94, %s108
      %p110 = scmp.eq.s32.totalorder %s21, 0
      %p111 = por %p109, %p110
      %s113 = sadd.s32 %s112, 1
      %p116 = scmp.eq.s32.totalorder %s15, 1
      %p117 = scmp.ne.s32.totalorder %s112, %s114
      %p118 = scmp.eq.s32.totalorder %s15, 0
      %p119 = por %p117, %p118
      %p120 = scmp.ne.s32.totalorder %s112, %s114
      %p121 = scmp.eq.s32.totalorder %s20, 1
      %p122 = por %p120, %p121
      %p123 = scmp.ne.s32.totalorder %s114, %s115
      %p124 = scmp.eq.s32.totalorder %s20, 0
      %p125 = por %p123, %p124
      %p126 = scmp.ne.s32.totalorder %s114, %s115
      %p127 = scmp.eq.s32.totalorder %s21, 1
      %p128 = por %p126, %p127
      %p130 = scmp.ne.s32.totalorder %s115, %s129
      %p131 = scmp.eq.s32.totalorder %s21, 0
      %p132 = por %p130, %p131
      %s134 = sadd.s32 %s133, 1
      %p137 = scmp.eq.s32.totalorder %s15, 1
      %p138 = scmp.ne.s32.totalorder %s133, %s135
      %p139 = scmp.eq.s32.totalorder %s15, 0
      %p140 = por %p138, %p139
      %p141 = scmp.ne.s32.totalorder %s133, %s135
      %p142 = scmp.eq.s32.totalorder %s20, 1
      %p143 = por %p141, %p142
      %p144 = scmp.ne.s32.totalorder %s135, %s136
      %p145 = scmp.eq.s32.totalorder %s20, 0
      %p146 = por %p144, %p145
      %p147 = scmp.ne.s32.totalorder %s135, %s136
      %p148 = scmp.eq.s32.totalorder %s21, 1
      %p149 = por %p147, %p148
      %p151 = scmp.ne.s32.totalorder %s136, %s150
      %p152 = scmp.eq.s32.totalorder %s21, 0
      %p153 = por %p151, %p152
      %s154 = ssub.s32 %s15, %s22
      %p155 = scmp.eq.s32.totalorder %s154, 0
      %s157 = sadd.s32 %s156, 1
      %s158 = scalar_select %p155, %s156, %s157
      %p161 = pneg %p155
      %p162 = scmp.eq.s32.totalorder %s15, 1
      %p163 = por %p161, %p162
      %p164 = scmp.ne.s32.totalorder %s156, %s159
      %p165 = scmp.eq.s32.totalorder %s15, 0
      %p166 = por %p164, %p165
      %p167 = scmp.ne.s32.totalorder %s156, %s159
      %p168 = scmp.eq.s32.totalorder %s20, 1
      %p169 = por %p167, %p168
      %p170 = scmp.ne.s32.totalorder %s159, %s160
      %p171 = scmp.eq.s32.totalorder %s20, 0
      %p172 = por %p170, %p171
      %p173 = scmp.ne.s32.totalorder %s159, %s160
      %p174 = scmp.eq.s32.totalorder %s21, 1
      %p175 = por %p173, %p174
      %p177 = scmp.ne.s32.totalorder %s160, %s176
      %p178 = scmp.eq.s32.totalorder %s21, 0
      %p179 = por %p177, %p178
      %p180 = scmp.le.s32.totalorder 1, %s15
      %p181 = scmp.lt.s32.totalorder %s15, 3
      %p182 = pnand %p180, %p181
      %p183 = pneg %p182
      // Predicated region
      $region9: #{tpu_custom_call.1} parent=5 // pred_check
        _
      $region10: #{tpu_custom_call.1} parent=5 // pred_check_branch
        %185 = sbr.rel (%p182) target = $region12
      $region11: #{tpu_custom_call.1} parent=5 // pred_region
        %s186 = ssub.s32 %s15, 1
        // Predicated region
        $region13: #{tpu_custom_call.1} parent=11 // pred_check
          %p187 = pneg %p62
        $region14: #{tpu_custom_call.1} parent=11 // pred_check_branch
          %189 = sbr.rel (%p187) target = $region16
        $region15: #{tpu_custom_call.1} parent=11 // pred_region
          _
        $region16: #{tpu_custom_call.1} parent=11 // pred_fallthru
          _
        // Predicated region
        $region17: #{tpu_custom_call.1} parent=11 // pred_check
          %p190 = pneg %p83
        $region18: #{tpu_custom_call.1} parent=11 // pred_check_branch
          %192 = sbr.rel (%p190) target = $region20
        $region19: #{tpu_custom_call.1} parent=11 // pred_region
          _
        $region20: #{tpu_custom_call.1} parent=11 // pred_fallthru
          _
        // Predicated region
        $region21: #{tpu_custom_call.1} parent=11 // pred_check
          %p193 = pneg %p104
        $region22: #{tpu_custom_call.1} parent=11 // pred_check_branch
          %195 = sbr.rel (%p193) target = $region24
        $region23: #{tpu_custom_call.1} parent=11 // pred_region
          _
        $region24: #{tpu_custom_call.1} parent=11 // pred_fallthru
          _
        // Predicated region
        $region25: #{tpu_custom_call.1} parent=11 // pred_check
          %p196 = pneg %p125
        $region26: #{tpu_custom_call.1} parent=11 // pred_check_branch
          %198 = sbr.rel (%p196) target = $region28
        $region27: #{tpu_custom_call.1} parent=11 // pred_region
          _
        $region28: #{tpu_custom_call.1} parent=11 // pred_fallthru
          _
        // Predicated region
        $region29: #{tpu_custom_call.1} parent=11 // pred_check
          %p199 = pneg %p146
        $region30: #{tpu_custom_call.1} parent=11 // pred_check_branch
          %201 = sbr.rel (%p199) target = $region32
        $region31: #{tpu_custom_call.1} parent=11 // pred_region
          _
        $region32: #{tpu_custom_call.1} parent=11 // pred_fallthru
          _
      $region12: #{tpu_custom_call.1} parent=5 // pred_fallthru
        _
      %p202 = scmp.lt.s32.totalorder %s15, 2
      // Predicated region
      $region33: #{tpu_custom_call.1} parent=5 // pred_check
        %p203 = pneg %p202
      $region34: #{tpu_custom_call.1} parent=5 // pred_check_branch
        %205 = sbr.rel (%p203) target = $region36
      $region35: #{tpu_custom_call.1} parent=5 // pred_region
        // Predicated region
        $region37: #{tpu_custom_call.1} parent=35 // pred_check
          %p206 = pneg %p35
        $region38: #{tpu_custom_call.1} parent=35 // pred_check_branch
          %208 = sbr.rel (%p206) target = $region40
        $region39: #{tpu_custom_call.1} parent=35 // pred_region
          %s209 = smul.u32 32, %s15
          %p210 = scmp.lt.s32.totalorder %s209, 63
          %s211 = scalar_select %p210, %s209, 63
          %s212 = smul.addr %s211, 8
          %s213 = scalar_lea.vmem %s0, %s212
          %s214 = smul.u32 32, %s15
        $region40: #{tpu_custom_call.1} parent=35 // pred_fallthru
          _
      $region36: #{tpu_custom_call.1} parent=5 // pred_fallthru
        _
      %p215 = scmp.le.s32.totalorder 1, %s15
      %p216 = scmp.lt.s32.totalorder %s15, 3
      %p217 = pnand %p215, %p216
      %p218 = pneg %p217
      // Predicated region
      $region41: #{tpu_custom_call.1} parent=5 // pred_check
        _
      $region42: #{tpu_custom_call.1} parent=5 // pred_check_branch
        %220 = sbr.rel (%p217) target = $region44
      $region43: #{tpu_custom_call.1} parent=5 // pred_region
        %s221 = ssub.s32 %s15, 1
        %s222 = smul.u32 32, %s20
        %p223 = scmp.lt.s32.totalorder %s222, 63
        %s224 = scalar_select %p223, %s222, 63
        %s225 = smul.addr %s224, 8
        %s226 = scalar_lea.vmem %s0, %s225
        %p227 = pneg %p41
        %p228 = pneg %p38
        %p229 = pneg %p62
        %p230 = pneg %p59
        %p231 = pneg %p83
        %p232 = pneg %p80
        %p233 = pneg %p104
        %p234 = pneg %p101
        %p235 = pneg %p125
        %p236 = pneg %p122
        %p237 = pneg %p146
        %p238 = pneg %p143
        %p239 = pneg %p172
        %p240 = pneg %p169
        %s241 = sand.u32 %s159, 1
        %s242 = scalar_lea.sflag [#allocation3], %s241
        %s243 = sand.u32 %s159, 1
        %s244 = smul.addr %s243, 128
        %s245 = scalar_lea.vmem [#allocation2], %s244
        %s246 = smul.u32 32, %s20
        %p247 = scmp.lt.s32.totalorder %s246, 63
        %s248 = scalar_select %p247, %s246, 63
        %s249 = smul.addr %s248, 8
        %s250 = scalar_lea.vmem %s0, %s249
        %s251 = smul.u32 32, %s20
        %s252 = smul.u32 32, %s20
        %v253 = vld [vmem:[%s250] sm:$0xff]
        %v254 = vld [vmem:[%s250 + $0x8] sm:$0xff]
        %v255 = vld [vmem:[%s250 + $0x10] sm:$0xff]
        %v256 = vld [vmem:[%s250 + $0x18] sm:$0xff]
        %v257 = vld [vmem:[%s250 + $0x20] sm:$0xff]
        %v258 = vld [vmem:[%s250 + $0x28] sm:$0xff]
        %v259 = vld [vmem:[%s250 + $0x30] sm:$0xff]
        %v260 = vld [vmem:[%s250 + $0x38] sm:$0xff]
        %v261 = vld [vmem:[%s250 + $0x40] sm:$0xff]
        %v262 = vld [vmem:[%s250 + $0x48] sm:$0xff]
        %v263 = vld [vmem:[%s250 + $0x50] sm:$0xff]
        %v264 = vld [vmem:[%s250 + $0x58] sm:$0xff]
        %v265 = vld [vmem:[%s250 + $0x60] sm:$0xff]
        %v266 = vld [vmem:[%s250 + $0x68] sm:$0xff]
        %v267 = vld [vmem:[%s250 + $0x70] sm:$0xff]
        %v268 = vld [vmem:[%s250 + $0x78] sm:$0xff]
        %v269 = vld [vmem:[%s250 + $0x80] sm:$0xff]
        %v270 = vld [vmem:[%s250 + $0x88] sm:$0xff]
        %v271 = vld [vmem:[%s250 + $0x90] sm:$0xff]
        %v272 = vld [vmem:[%s250 + $0x98] sm:$0xff]
        %v273 = vld [vmem:[%s250 + $0xa0] sm:$0xff]
        %v274 = vld [vmem:[%s250 + $0xa8] sm:$0xff]
        %v275 = vld [vmem:[%s250 + $0xb0] sm:$0xff]
        %v276 = vld [vmem:[%s250 + $0xb8] sm:$0xff]
        %v277 = vld [vmem:[%s250 + $0xc0] sm:$0xff]
        %v278 = vld [vmem:[%s250 + $0xc8] sm:$0xff]
        %v279 = vld [vmem:[%s250 + $0xd0] sm:$0xff]
        %v280 = vld [vmem:[%s250 + $0xd8] sm:$0xff]
        %v281 = vld [vmem:[%s250 + $0xe0] sm:$0xff]
        %v282 = vld [vmem:[%s250 + $0xe8] sm:$0xff]
        %v283 = vld [vmem:[%s250 + $0xf0] sm:$0xff]
        %v284 = vld [vmem:[%s250 + $0xf8] sm:$0xff]
        %v285 = vld [vmem:[%s1] sm:$0x1]
        %287 = vset.pattern.permute.xlu0 0
        %288 = vperm.xlu0 %287, %v253
        %v289 = vpop.permute.xlu0 %288
        %292 = vset.pattern.permute.xlu0 0
        %293 = vperm.xlu0 %292, %v254
        %v294 = vpop.permute.xlu0 %293
        %297 = vset.pattern.permute.xlu0 0
        %298 = vperm.xlu0 %297, %v255
        %v299 = vpop.permute.xlu0 %298
        %302 = vset.pattern.permute.xlu0 0
        %303 = vperm.xlu0 %302, %v256
        %v304 = vpop.permute.xlu0 %303
        %307 = vset.pattern.permute.xlu0 0
        %308 = vperm.xlu0 %307, %v257
        %v309 = vpop.permute.xlu0 %308
        %312 = vset.pattern.permute.xlu0 0
        %313 = vperm.xlu0 %312, %v258
        %v314 = vpop.permute.xlu0 %313
        %317 = vset.pattern.permute.xlu0 0
        %318 = vperm.xlu0 %317, %v259
        %v319 = vpop.permute.xlu0 %318
        %322 = vset.pattern.permute.xlu0 0
        %323 = vperm.xlu0 %322, %v260
        %v324 = vpop.permute.xlu0 %323
        %327 = vset.pattern.permute.xlu0 0
        %328 = vperm.xlu0 %327, %v261
        %v329 = vpop.permute.xlu0 %328
        %332 = vset.pattern.permute.xlu0 0
        %333 = vperm.xlu0 %332, %v262
        %v334 = vpop.permute.xlu0 %333
        %337 = vset.pattern.permute.xlu0 0
        %338 = vperm.xlu0 %337, %v263
        %v339 = vpop.permute.xlu0 %338
        %342 = vset.pattern.permute.xlu0 0
        %343 = vperm.xlu0 %342, %v264
        %v344 = vpop.permute.xlu0 %343
        %347 = vset.pattern.permute.xlu0 0
        %348 = vperm.xlu0 %347, %v265
        %v349 = vpop.permute.xlu0 %348
        %352 = vset.pattern.permute.xlu0 0
        %353 = vperm.xlu0 %352, %v266
        %v354 = vpop.permute.xlu0 %353
        %357 = vset.pattern.permute.xlu0 0
        %358 = vperm.xlu0 %357, %v267
        %v359 = vpop.permute.xlu0 %358
        %362 = vset.pattern.permute.xlu0 0
        %363 = vperm.xlu0 %362, %v268
        %v364 = vpop.permute.xlu0 %363
        %367 = vset.pattern.permute.xlu0 0
        %368 = vperm.xlu0 %367, %v269
        %v369 = vpop.permute.xlu0 %368
        %372 = vset.pattern.permute.xlu0 0
        %373 = vperm.xlu0 %372, %v270
        %v374 = vpop.permute.xlu0 %373
        %377 = vset.pattern.permute.xlu0 0
        %378 = vperm.xlu0 %377, %v271
        %v379 = vpop.permute.xlu0 %378
        %382 = vset.pattern.permute.xlu0 0
        %383 = vperm.xlu0 %382, %v272
        %v384 = vpop.permute.xlu0 %383
        %387 = vset.pattern.permute.xlu0 0
        %388 = vperm.xlu0 %387, %v273
        %v389 = vpop.permute.xlu0 %388
        %392 = vset.pattern.permute.xlu0 0
        %393 = vperm.xlu0 %392, %v274
        %v394 = vpop.permute.xlu0 %393
        %397 = vset.pattern.permute.xlu0 0
        %398 = vperm.xlu0 %397, %v275
        %v399 = vpop.permute.xlu0 %398
        %402 = vset.pattern.permute.xlu0 0
        %403 = vperm.xlu0 %402, %v276
        %v404 = vpop.permute.xlu0 %403
        %407 = vset.pattern.permute.xlu0 0
        %408 = vperm.xlu0 %407, %v277
        %v409 = vpop.permute.xlu0 %408
        %412 = vset.pattern.permute.xlu0 0
        %413 = vperm.xlu0 %412, %v278
        %v414 = vpop.permute.xlu0 %413
        %417 = vset.pattern.permute.xlu0 0
        %418 = vperm.xlu0 %417, %v279
        %v419 = vpop.permute.xlu0 %418
        %422 = vset.pattern.permute.xlu0 0
        %423 = vperm.xlu0 %422, %v280
        %v424 = vpop.permute.xlu0 %423
        %427 = vset.pattern.permute.xlu0 0
        %428 = vperm.xlu0 %427, %v281
        %v429 = vpop.permute.xlu0 %428
        %432 = vset.pattern.permute.xlu0 0
        %433 = vperm.xlu0 %432, %v282
        %v434 = vpop.permute.xlu0 %433
        %437 = vset.pattern.permute.xlu0 0
        %438 = vperm.xlu0 %437, %v283
        %v439 = vpop.permute.xlu0 %438
        %442 = vset.pattern.permute.xlu0 0
        %443 = vperm.xlu0 %442, %v284
        %v444 = vpop.permute.xlu0 %443
        %v447 = vperm.slane %v285, 0
        %v449 = vsub.f32 %v289, %v447
        %v450 = vsub.f32 %v294, %v447
        %v451 = vsub.f32 %v299, %v447
        %v452 = vsub.f32 %v304, %v447
        %v453 = vsub.f32 %v309, %v447
        %v454 = vsub.f32 %v314, %v447
        %v455 = vsub.f32 %v319, %v447
        %v456 = vsub.f32 %v324, %v447
        %v457 = vsub.f32 %v329, %v447
        %v458 = vsub.f32 %v334, %v447
        %v459 = vsub.f32 %v339, %v447
        %v460 = vsub.f32 %v344, %v447
        %v461 = vsub.f32 %v349, %v447
        %v462 = vsub.f32 %v354, %v447
        %v463 = vsub.f32 %v359, %v447
        %v464 = vsub.f32 %v364, %v447
        %v465 = vsub.f32 %v369, %v447
        %v466 = vsub.f32 %v374, %v447
        %v467 = vsub.f32 %v379, %v447
        %v468 = vsub.f32 %v384, %v447
        %v469 = vsub.f32 %v389, %v447
        %v470 = vsub.f32 %v394, %v447
        %v471 = vsub.f32 %v399, %v447
        %v472 = vsub.f32 %v404, %v447
        %v473 = vsub.f32 %v409, %v447
        %v474 = vsub.f32 %v414, %v447
        %v475 = vsub.f32 %v419, %v447
        %v476 = vsub.f32 %v424, %v447
        %v477 = vsub.f32 %v429, %v447
        %v478 = vsub.f32 %v434, %v447
        %v479 = vsub.f32 %v439, %v447
        %v480 = vsub.f32 %v444, %v447
        %v481 = vmul.f32 %v449, %v449
        %v482 = vmul.f32 %v450, %v450
        %v483 = vmul.f32 %v451, %v451
        %v484 = vmul.f32 %v452, %v452
        %v485 = vmul.f32 %v453, %v453
        %v486 = vmul.f32 %v454, %v454
        %v487 = vmul.f32 %v455, %v455
        %v488 = vmul.f32 %v456, %v456
        %v489 = vmul.f32 %v457, %v457
        %v490 = vmul.f32 %v458, %v458
        %v491 = vmul.f32 %v459, %v459
        %v492 = vmul.f32 %v460, %v460
        %v493 = vmul.f32 %v461, %v461
        %v494 = vmul.f32 %v462, %v462
        %v495 = vmul.f32 %v463, %v463
        %v496 = vmul.f32 %v464, %v464
        %v497 = vmul.f32 %v465, %v465
        %v498 = vmul.f32 %v466, %v466
        %v499 = vmul.f32 %v467, %v467
        %v500 = vmul.f32 %v468, %v468
        %v501 = vmul.f32 %v469, %v469
        %v502 = vmul.f32 %v470, %v470
        %v503 = vmul.f32 %v471, %v471
        %v504 = vmul.f32 %v472, %v472
        %v505 = vmul.f32 %v473, %v473
        %v506 = vmul.f32 %v474, %v474
        %v507 = vmul.f32 %v475, %v475
        %v508 = vmul.f32 %v476, %v476
        %v509 = vmul.f32 %v477, %v477
        %v510 = vmul.f32 %v478, %v478
        %v511 = vmul.f32 %v479, %v479
        %v512 = vmul.f32 %v480, %v480
        %v513 = vmul.f32 %v481, -99.56174
        %v514 = vmul.f32 %v482, -99.56174
        %v515 = vmul.f32 %v483, -99.56174
        %v516 = vmul.f32 %v484, -99.56174
        %v517 = vmul.f32 %v485, -99.56174
        %v518 = vmul.f32 %v486, -99.56174
        %v519 = vmul.f32 %v487, -99.56174
        %v520 = vmul.f32 %v488, -99.56174
        %v521 = vmul.f32 %v489, -99.56174
        %v522 = vmul.f32 %v490, -99.56174
        %v523 = vmul.f32 %v491, -99.56174
        %v524 = vmul.f32 %v492, -99.56174
        %v525 = vmul.f32 %v493, -99.56174
        %v526 = vmul.f32 %v494, -99.56174
        %v527 = vmul.f32 %v495, -99.56174
        %v528 = vmul.f32 %v496, -99.56174
        %v529 = vmul.f32 %v497, -99.56174
        %v530 = vmul.f32 %v498, -99.56174
        %v531 = vmul.f32 %v499, -99.56174
        %v532 = vmul.f32 %v500, -99.56174
        %v533 = vmul.f32 %v501, -99.56174
        %v534 = vmul.f32 %v502, -99.56174
        %v535 = vmul.f32 %v503, -99.56174
        %v536 = vmul.f32 %v504, -99.56174
        %v537 = vmul.f32 %v505, -99.56174
        %v538 = vmul.f32 %v506, -99.56174
        %v539 = vmul.f32 %v507, -99.56174
        %v540 = vmul.f32 %v508, -99.56174
        %v541 = vmul.f32 %v509, -99.56174
        %v542 = vmul.f32 %v510, -99.56174
        %v543 = vmul.f32 %v511, -99.56174
        %v544 = vmul.f32 %v512, -99.56174
        %v545 = vmul.f32 %v513, 1.442695
        %v546 = vpow.pop %v545
        %v547 = vmul.f32 %v514, 1.442695
        %v548 = vpow.pop %v547
        %v549 = vmul.f32 %v515, 1.442695
        %v550 = vpow.pop %v549
        %v551 = vmul.f32 %v516, 1.442695
        %v552 = vpow.pop %v551
        %v553 = vmul.f32 %v517, 1.442695
        %v554 = vpow.pop %v553
        %v555 = vmul.f32 %v518, 1.442695
        %v556 = vpow.pop %v555
        %v557 = vmul.f32 %v519, 1.442695
        %v558 = vpow.pop %v557
        %v559 = vmul.f32 %v520, 1.442695
        %v560 = vpow.pop %v559
        %v561 = vmul.f32 %v521, 1.442695
        %v562 = vpow.pop %v561
        %v563 = vmul.f32 %v522, 1.442695
        %v564 = vpow.pop %v563
        %v565 = vmul.f32 %v523, 1.442695
        %v566 = vpow.pop %v565
        %v567 = vmul.f32 %v524, 1.442695
        %v568 = vpow.pop %v567
        %v569 = vmul.f32 %v525, 1.442695
        %v570 = vpow.pop %v569
        %v571 = vmul.f32 %v526, 1.442695
        %v572 = vpow.pop %v571
        %v573 = vmul.f32 %v527, 1.442695
        %v574 = vpow.pop %v573
        %v575 = vmul.f32 %v528, 1.442695
        %v576 = vpow.pop %v575
        %v577 = vmul.f32 %v529, 1.442695
        %v578 = vpow.pop %v577
        %v579 = vmul.f32 %v530, 1.442695
        %v580 = vpow.pop %v579
        %v581 = vmul.f32 %v531, 1.442695
        %v582 = vpow.pop %v581
        %v583 = vmul.f32 %v532, 1.442695
        %v584 = vpow.pop %v583
        %v585 = vmul.f32 %v533, 1.442695
        %v586 = vpow.pop %v585
        %v587 = vmul.f32 %v534, 1.442695
        %v588 = vpow.pop %v587
        %v589 = vmul.f32 %v535, 1.442695
        %v590 = vpow.pop %v589
        %v591 = vmul.f32 %v536, 1.442695
        %v592 = vpow.pop %v591
        %v593 = vmul.f32 %v537, 1.442695
        %v594 = vpow.pop %v593
        %v595 = vmul.f32 %v538, 1.442695
        %v596 = vpow.pop %v595
        %v597 = vmul.f32 %v539, 1.442695
        %v598 = vpow.pop %v597
        %v599 = vmul.f32 %v540, 1.442695
        %v600 = vpow.pop %v599
        %v601 = vmul.f32 %v541, 1.442695
        %v602 = vpow.pop %v601
        %v603 = vmul.f32 %v542, 1.442695
        %v604 = vpow.pop %v603
        %v605 = vmul.f32 %v543, 1.442695
        %v606 = vpow.pop %v605
        %v607 = vmul.f32 %v544, 1.442695
        %v608 = vpow.pop %v607
        %v609 = vpack.c.bf16 %v548, %v546
        %v610 = vpack.c.bf16 %v552, %v550
        %v611 = vpack.c.bf16 %v556, %v554
        %v612 = vpack.c.bf16 %v560, %v558
        %v613 = vpack.c.bf16 %v564, %v562
        %v614 = vpack.c.bf16 %v568, %v566
        %v615 = vpack.c.bf16 %v572, %v570
        %v616 = vpack.c.bf16 %v576, %v574
        %v617 = vpack.c.bf16 %v580, %v578
        %v618 = vpack.c.bf16 %v584, %v582
        %v619 = vpack.c.bf16 %v588, %v586
        %v620 = vpack.c.bf16 %v592, %v590
        %v621 = vpack.c.bf16 %v596, %v594
        %v622 = vpack.c.bf16 %v600, %v598
        %v623 = vpack.c.bf16 %v604, %v602
        %v624 = vpack.c.bf16 %v608, %v606
        %v625 = vld [vmem:[%s2] sm:$0xf]
        %v626 = vld [vmem:[%s2 + $0x4] sm:$0xf]
        %v627 = vld [vmem:[%s2 + $0x8] sm:$0xf]
        %v628 = vld [vmem:[%s2 + $0xc] sm:$0xf]
        %v629 = vld [vmem:[%s2 + $0x10] sm:$0xf]
        %v630 = vld [vmem:[%s2 + $0x14] sm:$0xf]
        %v631 = vld [vmem:[%s2 + $0x18] sm:$0xf]
        %v632 = vld [vmem:[%s2 + $0x1c] sm:$0xf]
        %v633 = vld [vmem:[%s2 + $0x20] sm:$0xf]
        %v634 = vld [vmem:[%s2 + $0x24] sm:$0xf]
        %v635 = vld [vmem:[%s2 + $0x28] sm:$0xf]
        %v636 = vld [vmem:[%s2 + $0x2c] sm:$0xf]
        %v637 = vld [vmem:[%s2 + $0x30] sm:$0xf]
        %v638 = vld [vmem:[%s2 + $0x34] sm:$0xf]
        %v639 = vld [vmem:[%s2 + $0x38] sm:$0xf]
        %v640 = vld [vmem:[%s2 + $0x3c] sm:$0xf]
        %v641 = vld [vmem:[%s3] sm:$0x1]
        %v643 = vperm.slane %v641, 0
        %v661 = vunpack.c.l.b16 %v625
        %v662 = vunpack.c.l.b16 %v626
        %v663 = vunpack.c.l.b16 %v627
        %v664 = vunpack.c.l.b16 %v628
        %v665 = vunpack.c.l.b16 %v629
        %v666 = vunpack.c.l.b16 %v630
        %v667 = vunpack.c.l.b16 %v631
        %v668 = vunpack.c.l.b16 %v632
        %v669 = vunpack.c.l.b16 %v633
        %v670 = vunpack.c.l.b16 %v634
        %v671 = vunpack.c.l.b16 %v635
        %v672 = vunpack.c.l.b16 %v636
        %v673 = vunpack.c.l.b16 %v637
        %v674 = vunpack.c.l.b16 %v638
        %v675 = vunpack.c.l.b16 %v639
        %v676 = vunpack.c.l.b16 %v640
        %v677 = vpack.c.b16 %v662, %v661
        %v678 = vpack.c.b16 %v664, %v663
        %v679 = vpack.c.b16 %v666, %v665
        %v680 = vpack.c.b16 %v668, %v667
        %v681 = vpack.c.b16 %v670, %v669
        %v682 = vpack.c.b16 %v672, %v671
        %v683 = vpack.c.b16 %v674, %v673
        %v684 = vpack.c.b16 %v676, %v675
        %693 = vmatpush.bf16.msra.mxu0 %v684
        %694 = vmatpush.bf16.msra.mxu0 %v683
        %695 = vmatpush.bf16.msra.mxu0 %v682
        %696 = vmatpush.bf16.msra.mxu0 %v681
        %697 = vmatpush.bf16.msra.mxu0 %v680
        %698 = vmatpush.bf16.msra.mxu0 %v679
        %699 = vmatpush.bf16.msra.mxu0 %v678
        %700 = vmatpush.bf16.msra.mxu0 %v677
        %701 = vmatmul.bf16.gmra.mxu0 %v609
        %v702 = vpop.f32.mrf.mxu0
        %v703 = vadd.f32 %v643, %v702
        %v704 = vpop.f32.mrf.mxu0
        %v705 = vadd.f32 %v643, %v704
        %706 = vmatmul.bf16.gmra.mxu0 %v610
        %v707 = vpop.f32.mrf.mxu0
        %v708 = vadd.f32 %v643, %v707
        %v709 = vpop.f32.mrf.mxu0
        %v710 = vadd.f32 %v643, %v709
        %711 = vmatmul.bf16.gmra.mxu0 %v611
        %v712 = vpop.f32.mrf.mxu0
        %v713 = vadd.f32 %v643, %v712
        %v714 = vpop.f32.mrf.mxu0
        %v715 = vadd.f32 %v643, %v714
        %716 = vmatmul.bf16.gmra.mxu0 %v612
        %v717 = vpop.f32.mrf.mxu0
        %v718 = vadd.f32 %v643, %v717
        %v719 = vpop.f32.mrf.mxu0
        %v720 = vadd.f32 %v643, %v719
        %721 = vmatmul.bf16.gmra.mxu0 %v613
        %v722 = vpop.f32.mrf.mxu0
        %v723 = vadd.f32 %v643, %v722
        %v724 = vpop.f32.mrf.mxu0
        %v725 = vadd.f32 %v643, %v724
        %726 = vmatmul.bf16.gmra.mxu0 %v614
        %v727 = vpop.f32.mrf.mxu0
        %v728 = vadd.f32 %v643, %v727
        %v729 = vpop.f32.mrf.mxu0
        %v730 = vadd.f32 %v643, %v729
        %731 = vmatmul.bf16.gmra.mxu0 %v615
        %v732 = vpop.f32.mrf.mxu0
        %v733 = vadd.f32 %v643, %v732
        %v734 = vpop.f32.mrf.mxu0
        %v735 = vadd.f32 %v643, %v734
        %736 = vmatmul.bf16.gmra.mxu0 %v616
        %v737 = vpop.f32.mrf.mxu0
        %v738 = vadd.f32 %v643, %v737
        %v739 = vpop.f32.mrf.mxu0
        %v740 = vadd.f32 %v643, %v739
        %741 = vmatmul.bf16.gmra.mxu0 %v617
        %v742 = vpop.f32.mrf.mxu0
        %v743 = vadd.f32 %v643, %v742
        %v744 = vpop.f32.mrf.mxu0
        %v745 = vadd.f32 %v643, %v744
        %746 = vmatmul.bf16.gmra.mxu0 %v618
        %v747 = vpop.f32.mrf.mxu0
        %v748 = vadd.f32 %v643, %v747
        %v749 = vpop.f32.mrf.mxu0
        %v750 = vadd.f32 %v643, %v749
        %751 = vmatmul.bf16.gmra.mxu0 %v619
        %v752 = vpop.f32.mrf.mxu0
        %v753 = vadd.f32 %v643, %v752
        %v754 = vpop.f32.mrf.mxu0
        %v755 = vadd.f32 %v643, %v754
        %756 = vmatmul.bf16.gmra.mxu0 %v620
        %v757 = vpop.f32.mrf.mxu0
        %v758 = vadd.f32 %v643, %v757
        %v759 = vpop.f32.mrf.mxu0
        %v760 = vadd.f32 %v643, %v759
        %761 = vmatmul.bf16.gmra.mxu0 %v621
        %v762 = vpop.f32.mrf.mxu0
        %v763 = vadd.f32 %v643, %v762
        %v764 = vpop.f32.mrf.mxu0
        %v765 = vadd.f32 %v643, %v764
        %766 = vmatmul.bf16.gmra.mxu0 %v622
        %v767 = vpop.f32.mrf.mxu0
        %v768 = vadd.f32 %v643, %v767
        %v769 = vpop.f32.mrf.mxu0
        %v770 = vadd.f32 %v643, %v769
        %771 = vmatmul.bf16.gmra.mxu0 %v623
        %v772 = vpop.f32.mrf.mxu0
        %v773 = vadd.f32 %v643, %v772
        %v774 = vpop.f32.mrf.mxu0
        %v775 = vadd.f32 %v643, %v774
        %776 = vmatmul.bf16.gmra.mxu0 %v624
        %v777 = vpop.f32.mrf.mxu0
        %v778 = vadd.f32 %v643, %v777
        %v779 = vpop.f32.mrf.mxu0
        %v780 = vadd.f32 %v643, %v779
        %781 = vdwg.mxu0
        %v782 = vmul.f32 %v703, %v703
        %v783 = vmul.f32 %v705, %v705
        %v784 = vmul.f32 %v708, %v708
        %v785 = vmul.f32 %v710, %v710
        %v786 = vmul.f32 %v713, %v713
        %v787 = vmul.f32 %v715, %v715
        %v788 = vmul.f32 %v718, %v718
        %v789 = vmul.f32 %v720, %v720
        %v790 = vmul.f32 %v723, %v723
        %v791 = vmul.f32 %v725, %v725
        %v792 = vmul.f32 %v728, %v728
        %v793 = vmul.f32 %v730, %v730
        %v794 = vmul.f32 %v733, %v733
        %v795 = vmul.f32 %v735, %v735
        %v796 = vmul.f32 %v738, %v738
        %v797 = vmul.f32 %v740, %v740
        %v798 = vmul.f32 %v743, %v743
        %v799 = vmul.f32 %v745, %v745
        %v800 = vmul.f32 %v748, %v748
        %v801 = vmul.f32 %v750, %v750
        %v802 = vmul.f32 %v753, %v753
        %v803 = vmul.f32 %v755, %v755
        %v804 = vmul.f32 %v758, %v758
        %v805 = vmul.f32 %v760, %v760
        %v806 = vmul.f32 %v763, %v763
        %v807 = vmul.f32 %v765, %v765
        %v808 = vmul.f32 %v768, %v768
        %v809 = vmul.f32 %v770, %v770
        %v810 = vmul.f32 %v773, %v773
        %v811 = vmul.f32 %v775, %v775
        %v812 = vmul.f32 %v778, %v778
        %v813 = vmul.f32 %v780, %v780
        %v814 = vmul.f32 %v703, %v782
        %v815 = vmul.f32 %v705, %v783
        %v816 = vmul.f32 %v708, %v784
        %v817 = vmul.f32 %v710, %v785
        %v818 = vmul.f32 %v713, %v786
        %v819 = vmul.f32 %v715, %v787
        %v820 = vmul.f32 %v718, %v788
        %v821 = vmul.f32 %v720, %v789
        %v822 = vmul.f32 %v723, %v790
        %v823 = vmul.f32 %v725, %v791
        %v824 = vmul.f32 %v728, %v792
        %v825 = vmul.f32 %v730, %v793
        %v826 = vmul.f32 %v733, %v794
        %v827 = vmul.f32 %v735, %v795
        %v828 = vmul.f32 %v738, %v796
        %v829 = vmul.f32 %v740, %v797
        %v830 = vmul.f32 %v743, %v798
        %v831 = vmul.f32 %v745, %v799
        %v832 = vmul.f32 %v748, %v800
        %v833 = vmul.f32 %v750, %v801
        %v834 = vmul.f32 %v753, %v802
        %v835 = vmul.f32 %v755, %v803
        %v836 = vmul.f32 %v758, %v804
        %v837 = vmul.f32 %v760, %v805
        %v838 = vmul.f32 %v763, %v806
        %v839 = vmul.f32 %v765, %v807
        %v840 = vmul.f32 %v768, %v808
        %v841 = vmul.f32 %v770, %v809
        %v842 = vmul.f32 %v773, %v810
        %v843 = vmul.f32 %v775, %v811
        %v844 = vmul.f32 %v778, %v812
        %v845 = vmul.f32 %v780, %v813
        %v846 = vmul.f32 %v814, 0.044715
        %v847 = vmul.f32 %v815, 0.044715
        %v848 = vmul.f32 %v816, 0.044715
        %v849 = vmul.f32 %v817, 0.044715
        %v850 = vmul.f32 %v818, 0.044715
        %v851 = vmul.f32 %v819, 0.044715
        %v852 = vmul.f32 %v820, 0.044715
        %v853 = vmul.f32 %v821, 0.044715
        %v854 = vmul.f32 %v822, 0.044715
        %v855 = vmul.f32 %v823, 0.044715
        %v856 = vmul.f32 %v824, 0.044715
        %v857 = vmul.f32 %v825, 0.044715
        %v858 = vmul.f32 %v826, 0.044715
        %v859 = vmul.f32 %v827, 0.044715
        %v860 = vmul.f32 %v828, 0.044715
        %v861 = vmul.f32 %v829, 0.044715
        %v862 = vmul.f32 %v830, 0.044715
        %v863 = vmul.f32 %v831, 0.044715
        %v864 = vmul.f32 %v832, 0.044715
        %v865 = vmul.f32 %v833, 0.044715
        %v866 = vmul.f32 %v834, 0.044715
        %v867 = vmul.f32 %v835, 0.044715
        %v868 = vmul.f32 %v836, 0.044715
        %v869 = vmul.f32 %v837, 0.044715
        %v870 = vmul.f32 %v838, 0.044715
        %v871 = vmul.f32 %v839, 0.044715
        %v872 = vmul.f32 %v840, 0.044715
        %v873 = vmul.f32 %v841, 0.044715
        %v874 = vmul.f32 %v842, 0.044715
        %v875 = vmul.f32 %v843, 0.044715
        %v876 = vmul.f32 %v844, 0.044715
        %v877 = vmul.f32 %v845, 0.044715
        %v878 = vadd.f32 %v703, %v846
        %v879 = vadd.f32 %v705, %v847
        %v880 = vadd.f32 %v708, %v848
        %v881 = vadd.f32 %v710, %v849
        %v882 = vadd.f32 %v713, %v850
        %v883 = vadd.f32 %v715, %v851
        %v884 = vadd.f32 %v718, %v852
        %v885 = vadd.f32 %v720, %v853
        %v886 = vadd.f32 %v723, %v854
        %v887 = vadd.f32 %v725, %v855
        %v888 = vadd.f32 %v728, %v856
        %v889 = vadd.f32 %v730, %v857
        %v890 = vadd.f32 %v733, %v858
        %v891 = vadd.f32 %v735, %v859
        %v892 = vadd.f32 %v738, %v860
        %v893 = vadd.f32 %v740, %v861
        %v894 = vadd.f32 %v743, %v862
        %v895 = vadd.f32 %v745, %v863
        %v896 = vadd.f32 %v748, %v864
        %v897 = vadd.f32 %v750, %v865
        %v898 = vadd.f32 %v753, %v866
        %v899 = vadd.f32 %v755, %v867
        %v900 = vadd.f32 %v758, %v868
        %v901 = vadd.f32 %v760, %v869
        %v902 = vadd.f32 %v763, %v870
        %v903 = vadd.f32 %v765, %v871
        %v904 = vadd.f32 %v768, %v872
        %v905 = vadd.f32 %v770, %v873
        %v906 = vadd.f32 %v773, %v874
        %v907 = vadd.f32 %v775, %v875
        %v908 = vadd.f32 %v778, %v876
        %v909 = vadd.f32 %v780, %v877
        %v910 = vmul.f32 %v878, 0.7978846
        %v911 = vmul.f32 %v879, 0.7978846
        %v912 = vmul.f32 %v880, 0.7978846
        %v913 = vmul.f32 %v881, 0.7978846
        %v914 = vmul.f32 %v882, 0.7978846
        %v915 = vmul.f32 %v883, 0.7978846
        %v916 = vmul.f32 %v884, 0.7978846
        %v917 = vmul.f32 %v885, 0.7978846
        %v918 = vmul.f32 %v886, 0.7978846
        %v919 = vmul.f32 %v887, 0.7978846
        %v920 = vmul.f32 %v888, 0.7978846
        %v921 = vmul.f32 %v889, 0.7978846
        %v922 = vmul.f32 %v890, 0.7978846
        %v923 = vmul.f32 %v891, 0.7978846
        %v924 = vmul.f32 %v892, 0.7978846
        %v925 = vmul.f32 %v893, 0.7978846
        %v926 = vmul.f32 %v894, 0.7978846
        %v927 = vmul.f32 %v895, 0.7978846
        %v928 = vmul.f32 %v896, 0.7978846
        %v929 = vmul.f32 %v897, 0.7978846
        %v930 = vmul.f32 %v898, 0.7978846
        %v931 = vmul.f32 %v899, 0.7978846
        %v932 = vmul.f32 %v900, 0.7978846
        %v933 = vmul.f32 %v901, 0.7978846
        %v934 = vmul.f32 %v902, 0.7978846
        %v935 = vmul.f32 %v903, 0.7978846
        %v936 = vmul.f32 %v904, 0.7978846
        %v937 = vmul.f32 %v905, 0.7978846
        %v938 = vmul.f32 %v906, 0.7978846
        %v939 = vmul.f32 %v907, 0.7978846
        %v940 = vmul.f32 %v908, 0.7978846
        %v941 = vmul.f32 %v909, 0.7978846
        %v942 = vtanh.pop %v910
        %v943 = vtanh.pop %v911
        %v944 = vtanh.pop %v912
        %v945 = vtanh.pop %v913
        %v946 = vtanh.pop %v914
        %v947 = vtanh.pop %v915
        %v948 = vtanh.pop %v916
        %v949 = vtanh.pop %v917
        %v950 = vtanh.pop %v918
        %v951 = vtanh.pop %v919
        %v952 = vtanh.pop %v920
        %v953 = vtanh.pop %v921
        %v954 = vtanh.pop %v922
        %v955 = vtanh.pop %v923
        %v956 = vtanh.pop %v924
        %v957 = vtanh.pop %v925
        %v958 = vtanh.pop %v926
        %v959 = vtanh.pop %v927
        %v960 = vtanh.pop %v928
        %v961 = vtanh.pop %v929
        %v962 = vtanh.pop %v930
        %v963 = vtanh.pop %v931
        %v964 = vtanh.pop %v932
        %v965 = vtanh.pop %v933
        %v966 = vtanh.pop %v934
        %v967 = vtanh.pop %v935
        %v968 = vtanh.pop %v936
        %v969 = vtanh.pop %v937
        %v970 = vtanh.pop %v938
        %v971 = vtanh.pop %v939
        %v972 = vtanh.pop %v940
        %v973 = vtanh.pop %v941
        %v974 = vadd.f32 %v942, 1.0
        %v975 = vadd.f32 %v943, 1.0
        %v976 = vadd.f32 %v944, 1.0
        %v977 = vadd.f32 %v945, 1.0
        %v978 = vadd.f32 %v946, 1.0
        %v979 = vadd.f32 %v947, 1.0
        %v980 = vadd.f32 %v948, 1.0
        %v981 = vadd.f32 %v949, 1.0
        %v982 = vadd.f32 %v950, 1.0
        %v983 = vadd.f32 %v951, 1.0
        %v984 = vadd.f32 %v952, 1.0
        %v985 = vadd.f32 %v953, 1.0
        %v986 = vadd.f32 %v954, 1.0
        %v987 = vadd.f32 %v955, 1.0
        %v988 = vadd.f32 %v956, 1.0
        %v989 = vadd.f32 %v957, 1.0
        %v990 = vadd.f32 %v958, 1.0
        %v991 = vadd.f32 %v959, 1.0
        %v992 = vadd.f32 %v960, 1.0
        %v993 = vadd.f32 %v961, 1.0
        %v994 = vadd.f32 %v962, 1.0
        %v995 = vadd.f32 %v963, 1.0
        %v996 = vadd.f32 %v964, 1.0
        %v997 = vadd.f32 %v965, 1.0
        %v998 = vadd.f32 %v966, 1.0
        %v999 = vadd.f32 %v967, 1.0
        %v1000 = vadd.f32 %v968, 1.0
        %v1001 = vadd.f32 %v969, 1.0
        %v1002 = vadd.f32 %v970, 1.0
        %v1003 = vadd.f32 %v971, 1.0
        %v1004 = vadd.f32 %v972, 1.0
        %v1005 = vadd.f32 %v973, 1.0
        %v1006 = vmul.f32 %v974, 0.5
        %v1007 = vmul.f32 %v975, 0.5
        %v1008 = vmul.f32 %v976, 0.5
        %v1009 = vmul.f32 %v977, 0.5
        %v1010 = vmul.f32 %v978, 0.5
        %v1011 = vmul.f32 %v979, 0.5
        %v1012 = vmul.f32 %v980, 0.5
        %v1013 = vmul.f32 %v981, 0.5
        %v1014 = vmul.f32 %v982, 0.5
        %v1015 = vmul.f32 %v983, 0.5
        %v1016 = vmul.f32 %v984, 0.5
        %v1017 = vmul.f32 %v985, 0.5
        %v1018 = vmul.f32 %v986, 0.5
        %v1019 = vmul.f32 %v987, 0.5
        %v1020 = vmul.f32 %v988, 0.5
        %v1021 = vmul.f32 %v989, 0.5
        %v1022 = vmul.f32 %v990, 0.5
        %v1023 = vmul.f32 %v991, 0.5
        %v1024 = vmul.f32 %v992, 0.5
        %v1025 = vmul.f32 %v993, 0.5
        %v1026 = vmul.f32 %v994, 0.5
        %v1027 = vmul.f32 %v995, 0.5
        %v1028 = vmul.f32 %v996, 0.5
        %v1029 = vmul.f32 %v997, 0.5
        %v1030 = vmul.f32 %v998, 0.5
        %v1031 = vmul.f32 %v999, 0.5
        %v1032 = vmul.f32 %v1000, 0.5
        %v1033 = vmul.f32 %v1001, 0.5
        %v1034 = vmul.f32 %v1002, 0.5
        %v1035 = vmul.f32 %v1003, 0.5
        %v1036 = vmul.f32 %v1004, 0.5
        %v1037 = vmul.f32 %v1005, 0.5
        %v1038 = vmul.f32 %v703, %v1006
        %v1039 = vmul.f32 %v705, %v1007
        %v1040 = vmul.f32 %v708, %v1008
        %v1041 = vmul.f32 %v710, %v1009
        %v1042 = vmul.f32 %v713, %v1010
        %v1043 = vmul.f32 %v715, %v1011
        %v1044 = vmul.f32 %v718, %v1012
        %v1045 = vmul.f32 %v720, %v1013
        %v1046 = vmul.f32 %v723, %v1014
        %v1047 = vmul.f32 %v725, %v1015
        %v1048 = vmul.f32 %v728, %v1016
        %v1049 = vmul.f32 %v730, %v1017
        %v1050 = vmul.f32 %v733, %v1018
        %v1051 = vmul.f32 %v735, %v1019
        %v1052 = vmul.f32 %v738, %v1020
        %v1053 = vmul.f32 %v740, %v1021
        %v1054 = vmul.f32 %v743, %v1022
        %v1055 = vmul.f32 %v745, %v1023
        %v1056 = vmul.f32 %v748, %v1024
        %v1057 = vmul.f32 %v750, %v1025
        %v1058 = vmul.f32 %v753, %v1026
        %v1059 = vmul.f32 %v755, %v1027
        %v1060 = vmul.f32 %v758, %v1028
        %v1061 = vmul.f32 %v760, %v1029
        %v1062 = vmul.f32 %v763, %v1030
        %v1063 = vmul.f32 %v765, %v1031
        %v1064 = vmul.f32 %v768, %v1032
        %v1065 = vmul.f32 %v770, %v1033
        %v1066 = vmul.f32 %v773, %v1034
        %v1067 = vmul.f32 %v775, %v1035
        %v1068 = vmul.f32 %v778, %v1036
        %v1069 = vmul.f32 %v780, %v1037
        %v1070 = vpack.c.bf16 %v1039, %v1038
        %v1071 = vpack.c.bf16 %v1041, %v1040
        %v1072 = vpack.c.bf16 %v1043, %v1042
        %v1073 = vpack.c.bf16 %v1045, %v1044
        %v1074 = vpack.c.bf16 %v1047, %v1046
        %v1075 = vpack.c.bf16 %v1049, %v1048
        %v1076 = vpack.c.bf16 %v1051, %v1050
        %v1077 = vpack.c.bf16 %v1053, %v1052
        %v1078 = vpack.c.bf16 %v1055, %v1054
        %v1079 = vpack.c.bf16 %v1057, %v1056
        %v1080 = vpack.c.bf16 %v1059, %v1058
        %v1081 = vpack.c.bf16 %v1061, %v1060
        %v1082 = vpack.c.bf16 %v1063, %v1062
        %v1083 = vpack.c.bf16 %v1065, %v1064
        %v1084 = vpack.c.bf16 %v1067, %v1066
        %v1085 = vpack.c.bf16 %v1069, %v1068
        %v1086 = vld [vmem:[%s4] sm:$0xf]
        %v1087 = vld [vmem:[%s4 + $0x4] sm:$0xf]
        %v1088 = vld [vmem:[%s4 + $0x8] sm:$0xf]
        %v1089 = vld [vmem:[%s4 + $0xc] sm:$0xf]
        %v1090 = vld [vmem:[%s4 + $0x10] sm:$0xf]
        %v1091 = vld [vmem:[%s4 + $0x14] sm:$0xf]
        %v1092 = vld [vmem:[%s4 + $0x18] sm:$0xf]
        %v1093 = vld [vmem:[%s4 + $0x1c] sm:$0xf]
        %v1094 = vld [vmem:[%s4 + $0x20] sm:$0xf]
        %v1095 = vld [vmem:[%s4 + $0x24] sm:$0xf]
        %v1096 = vld [vmem:[%s4 + $0x28] sm:$0xf]
        %v1097 = vld [vmem:[%s4 + $0x2c] sm:$0xf]
        %v1098 = vld [vmem:[%s4 + $0x30] sm:$0xf]
        %v1099 = vld [vmem:[%s4 + $0x34] sm:$0xf]
        %v1100 = vld [vmem:[%s4 + $0x38] sm:$0xf]
        %v1101 = vld [vmem:[%s4 + $0x3c] sm:$0xf]
        %v1102 = vld [vmem:[%s5] sm:$0x1]
        %v1104 = vperm.slane %v1102, 0
        %v1122 = vunpack.c.l.b16 %v1086
        %v1123 = vunpack.c.l.b16 %v1087
        %v1124 = vunpack.c.l.b16 %v1088
        %v1125 = vunpack.c.l.b16 %v1089
        %v1126 = vunpack.c.l.b16 %v1090
        %v1127 = vunpack.c.l.b16 %v1091
        %v1128 = vunpack.c.l.b16 %v1092
        %v1129 = vunpack.c.l.b16 %v1093
        %v1130 = vunpack.c.l.b16 %v1094
        %v1131 = vunpack.c.l.b16 %v1095
        %v1132 = vunpack.c.l.b16 %v1096
        %v1133 = vunpack.c.l.b16 %v1097
        %v1134 = vunpack.c.l.b16 %v1098
        %v1135 = vunpack.c.l.b16 %v1099
        %v1136 = vunpack.c.l.b16 %v1100
        %v1137 = vunpack.c.l.b16 %v1101
        %v1138 = vpack.c.b16 %v1123, %v1122
        %v1139 = vpack.c.b16 %v1125, %v1124
        %v1140 = vpack.c.b16 %v1127, %v1126
        %v1141 = vpack.c.b16 %v1129, %v1128
        %v1142 = vpack.c.b16 %v1131, %v1130
        %v1143 = vpack.c.b16 %v1133, %v1132
        %v1144 = vpack.c.b16 %v1135, %v1134
        %v1145 = vpack.c.b16 %v1137, %v1136
        %1154 = vmatpush.bf16.msra.mxu0 %v1145
        %1155 = vmatpush.bf16.msra.mxu0 %v1144
        %1156 = vmatpush.bf16.msra.mxu0 %v1143
        %1157 = vmatpush.bf16.msra.mxu0 %v1142
        %1158 = vmatpush.bf16.msra.mxu0 %v1141
        %1159 = vmatpush.bf16.msra.mxu0 %v1140
        %1160 = vmatpush.bf16.msra.mxu0 %v1139
        %1161 = vmatpush.bf16.msra.mxu0 %v1138
        %1162 = vmatmul.bf16.gmra.mxu0 %v1070
        %v1163 = vpop.f32.mrf.mxu0
        %v1164 = vadd.f32 %v1104, %v1163
        %v1165 = vpop.f32.mrf.mxu0
        %v1166 = vadd.f32 %v1104, %v1165
        %1167 = vmatmul.bf16.gmra.mxu0 %v1071
        %v1168 = vpop.f32.mrf.mxu0
        %v1169 = vadd.f32 %v1104, %v1168
        %v1170 = vpop.f32.mrf.mxu0
        %v1171 = vadd.f32 %v1104, %v1170
        %1172 = vmatmul.bf16.gmra.mxu0 %v1072
        %v1173 = vpop.f32.mrf.mxu0
        %v1174 = vadd.f32 %v1104, %v1173
        %v1175 = vpop.f32.mrf.mxu0
        %v1176 = vadd.f32 %v1104, %v1175
        %1177 = vmatmul.bf16.gmra.mxu0 %v1073
        %v1178 = vpop.f32.mrf.mxu0
        %v1179 = vadd.f32 %v1104, %v1178
        %v1180 = vpop.f32.mrf.mxu0
        %v1181 = vadd.f32 %v1104, %v1180
        %1182 = vmatmul.bf16.gmra.mxu0 %v1074
        %v1183 = vpop.f32.mrf.mxu0
        %v1184 = vadd.f32 %v1104, %v1183
        %v1185 = vpop.f32.mrf.mxu0
        %v1186 = vadd.f32 %v1104, %v1185
        %1187 = vmatmul.bf16.gmra.mxu0 %v1075
        %v1188 = vpop.f32.mrf.mxu0
        %v1189 = vadd.f32 %v1104, %v1188
        %v1190 = vpop.f32.mrf.mxu0
        %v1191 = vadd.f32 %v1104, %v1190
        %1192 = vmatmul.bf16.gmra.mxu0 %v1076
        %v1193 = vpop.f32.mrf.mxu0
        %v1194 = vadd.f32 %v1104, %v1193
        %v1195 = vpop.f32.mrf.mxu0
        %v1196 = vadd.f32 %v1104, %v1195
        %1197 = vmatmul.bf16.gmra.mxu0 %v1077
        %v1198 = vpop.f32.mrf.mxu0
        %v1199 = vadd.f32 %v1104, %v1198
        %v1200 = vpop.f32.mrf.mxu0
        %v1201 = vadd.f32 %v1104, %v1200
        %1202 = vmatmul.bf16.gmra.mxu0 %v1078
        %v1203 = vpop.f32.mrf.mxu0
        %v1204 = vadd.f32 %v1104, %v1203
        %v1205 = vpop.f32.mrf.mxu0
        %v1206 = vadd.f32 %v1104, %v1205
        %1207 = vmatmul.bf16.gmra.mxu0 %v1079
        %v1208 = vpop.f32.mrf.mxu0
        %v1209 = vadd.f32 %v1104, %v1208
        %v1210 = vpop.f32.mrf.mxu0
        %v1211 = vadd.f32 %v1104, %v1210
        %1212 = vmatmul.bf16.gmra.mxu0 %v1080
        %v1213 = vpop.f32.mrf.mxu0
        %v1214 = vadd.f32 %v1104, %v1213
        %v1215 = vpop.f32.mrf.mxu0
        %v1216 = vadd.f32 %v1104, %v1215
        %1217 = vmatmul.bf16.gmra.mxu0 %v1081
        %v1218 = vpop.f32.mrf.mxu0
        %v1219 = vadd.f32 %v1104, %v1218
        %v1220 = vpop.f32.mrf.mxu0
        %v1221 = vadd.f32 %v1104, %v1220
        %1222 = vmatmul.bf16.gmra.mxu0 %v1082
        %v1223 = vpop.f32.mrf.mxu0
        %v1224 = vadd.f32 %v1104, %v1223
        %v1225 = vpop.f32.mrf.mxu0
        %v1226 = vadd.f32 %v1104, %v1225
        %1227 = vmatmul.bf16.gmra.mxu0 %v1083
        %v1228 = vpop.f32.mrf.mxu0
        %v1229 = vadd.f32 %v1104, %v1228
        %v1230 = vpop.f32.mrf.mxu0
        %v1231 = vadd.f32 %v1104, %v1230
        %1232 = vmatmul.bf16.gmra.mxu0 %v1084
        %v1233 = vpop.f32.mrf.mxu0
        %v1234 = vadd.f32 %v1104, %v1233
        %v1235 = vpop.f32.mrf.mxu0
        %v1236 = vadd.f32 %v1104, %v1235
        %1237 = vmatmul.bf16.gmra.mxu0 %v1085
        %v1238 = vpop.f32.mrf.mxu0
        %v1239 = vadd.f32 %v1104, %v1238
        %v1240 = vpop.f32.mrf.mxu0
        %v1241 = vadd.f32 %v1104, %v1240
        %1242 = vdwg.mxu0
        %v1243 = vpack.c.bf16 %v1164, %v1164
        %v1244 = vpack.c.bf16 %v1166, %v1166
        %v1245 = vpack.c.bf16 %v1169, %v1169
        %v1246 = vpack.c.bf16 %v1171, %v1171
        %v1247 = vpack.c.bf16 %v1174, %v1174
        %v1248 = vpack.c.bf16 %v1176, %v1176
        %v1249 = vpack.c.bf16 %v1179, %v1179
        %v1250 = vpack.c.bf16 %v1181, %v1181
        %v1251 = vpack.c.bf16 %v1184, %v1184
        %v1252 = vpack.c.bf16 %v1186, %v1186
        %v1253 = vpack.c.bf16 %v1189, %v1189
        %v1254 = vpack.c.bf16 %v1191, %v1191
        %v1255 = vpack.c.bf16 %v1194, %v1194
        %v1256 = vpack.c.bf16 %v1196, %v1196
        %v1257 = vpack.c.bf16 %v1199, %v1199
        %v1258 = vpack.c.bf16 %v1201, %v1201
        %v1259 = vpack.c.bf16 %v1204, %v1204
        %v1260 = vpack.c.bf16 %v1206, %v1206
        %v1261 = vpack.c.bf16 %v1209, %v1209
        %v1262 = vpack.c.bf16 %v1211, %v1211
        %v1263 = vpack.c.bf16 %v1214, %v1214
        %v1264 = vpack.c.bf16 %v1216, %v1216
        %v1265 = vpack.c.bf16 %v1219, %v1219
        %v1266 = vpack.c.bf16 %v1221, %v1221
        %v1267 = vpack.c.bf16 %v1224, %v1224
        %v1268 = vpack.c.bf16 %v1226, %v1226
        %v1269 = vpack.c.bf16 %v1229, %v1229
        %v1270 = vpack.c.bf16 %v1231, %v1231
        %v1271 = vpack.c.bf16 %v1234, %v1234
        %v1272 = vpack.c.bf16 %v1236, %v1236
        %v1273 = vpack.c.bf16 %v1239, %v1239
        %v1274 = vpack.c.bf16 %v1241, %v1241
        %1275 = vst [vmem:[%s245] sm:$0xf] %v1243
        %1276 = vst [vmem:[%s245 + $0x4] sm:$0xf] %v1244
        %1277 = vst [vmem:[%s245 + $0x8] sm:$0xf] %v1245
        %1278 = vst [vmem:[%s245 + $0xc] sm:$0xf] %v1246
        %1279 = vst [vmem:[%s245 + $0x10] sm:$0xf] %v1247
        %1280 = vst [vmem:[%s245 + $0x14] sm:$0xf] %v1248
        %1281 = vst [vmem:[%s245 + $0x18] sm:$0xf] %v1249
        %1282 = vst [vmem:[%s245 + $0x1c] sm:$0xf] %v1250
        %1283 = vst [vmem:[%s245 + $0x20] sm:$0xf] %v1251
        %1284 = vst [vmem:[%s245 + $0x24] sm:$0xf] %v1252
        %1285 = vst [vmem:[%s245 + $0x28] sm:$0xf] %v1253
        %1286 = vst [vmem:[%s245 + $0x2c] sm:$0xf] %v1254
        %1287 = vst [vmem:[%s245 + $0x30] sm:$0xf] %v1255
        %1288 = vst [vmem:[%s245 + $0x34] sm:$0xf] %v1256
        %1289 = vst [vmem:[%s245 + $0x38] sm:$0xf] %v1257
        %1290 = vst [vmem:[%s245 + $0x3c] sm:$0xf] %v1258
        %1291 = vst [vmem:[%s245 + $0x40] sm:$0xf] %v1259
        %1292 = vst [vmem:[%s245 + $0x44] sm:$0xf] %v1260
        %1293 = vst [vmem:[%s245 + $0x48] sm:$0xf] %v1261
        %1294 = vst [vmem:[%s245 + $0x4c] sm:$0xf] %v1262
        %1295 = vst [vmem:[%s245 + $0x50] sm:$0xf] %v1263
        %1296 = vst [vmem:[%s245 + $0x54] sm:$0xf] %v1264
        %1297 = vst [vmem:[%s245 + $0x58] sm:$0xf] %v1265
        %1298 = vst [vmem:[%s245 + $0x5c] sm:$0xf] %v1266
        %1299 = vst [vmem:[%s245 + $0x60] sm:$0xf] %v1267
        %1300 = vst [vmem:[%s245 + $0x64] sm:$0xf] %v1268
        %1301 = vst [vmem:[%s245 + $0x68] sm:$0xf] %v1269
        %1302 = vst [vmem:[%s245 + $0x6c] sm:$0xf] %v1270
        %1303 = vst [vmem:[%s245 + $0x70] sm:$0xf] %v1271
        %1304 = vst [vmem:[%s245 + $0x74] sm:$0xf] %v1272
        %1305 = vst [vmem:[%s245 + $0x78] sm:$0xf] %v1273
        %1306 = vst [vmem:[%s245 + $0x7c] sm:$0xf] %v1274
        %s1307 = sand.u32 %s159, 1
        %s1308 = scalar_lea.sflag [#allocation3], %s1307
        %s1309 = sand.u32 %s159, 1
        %s1310 = smul.addr %s1309, 128
        %s1311 = scalar_lea.vmem [#allocation2], %s1310
        // Predicated region
        $region45: #{tpu_custom_call.1} parent=43 // pred_check
          %p1312 = pneg %p169
        $region46: #{tpu_custom_call.1} parent=43 // pred_check_branch
          %1314 = sbr.rel (%p1312) target = $region48
        $region47: #{tpu_custom_call.1} parent=43 // pred_region
          %s1315 = smul.u32 32, %s20
          %1317 = vsyncadd %s1308, 0
          %s1318 = smul.addr %s1315, 4
          %s1319 = scalar_lea.hbm %s6, %s1318
          %s1320 = sshll.u32 %s1311, 4
          %s1321 = int_to_ptr.vmem [resolvable:$true] %s1320
          %s1322 = sshll.u32 %s1319, 4
          %s1323 = int_to_ptr.hbm [resolvable:$true] %s1322
          %1328 = dma.vmem_to_hbm [thread:$0]  %s1321, 2048, %s1323, %s1308, 64, 64, 4
        $region48: #{tpu_custom_call.1} parent=43 // pred_fallthru
          _
      $region44: #{tpu_custom_call.1} parent=5 // pred_fallthru
        _
      %p1329 = scmp.le.s32.totalorder 2, %s15
      // Predicated region
      $region49: #{tpu_custom_call.1} parent=5 // pred_check
        %p1330 = pneg %p1329
      $region50: #{tpu_custom_call.1} parent=5 // pred_check_branch
        %1332 = sbr.rel (%p1330) target = $region52
      $region51: #{tpu_custom_call.1} parent=5 // pred_region
        %s1333 = ssub.s32 %s15, 2
        // Predicated region
        $region53: #{tpu_custom_call.1} parent=51 // pred_check
          %p1334 = pneg %p175
        $region54: #{tpu_custom_call.1} parent=51 // pred_check_branch
          %1336 = sbr.rel (%p1334) target = $region56
        $region55: #{tpu_custom_call.1} parent=51 // pred_region
          %s1337 = sand.u32 %s160, 1
          %s1338 = scalar_lea.sflag [#allocation3], %s1337
          %s1339 = sand.u32 %s160, 1
          %s1340 = smul.addr %s1339, 128
          %s1341 = scalar_lea.vmem [#allocation2], %s1340
          %1343 = dma.done %s1338, 2048
        $region56: #{tpu_custom_call.1} parent=51 // pred_fallthru
          _
      $region52: #{tpu_custom_call.1} parent=5 // pred_fallthru
        _
    $region6: #{tpu_custom_call.1} parent=1 // loop_footer
      %s19 = sadd.s32 1, %s15
    $region7: #{tpu_custom_call.1} parent=1 // loop_footer_branch
      %14 = sbr.rel target = $region3
    $region8: #{tpu_custom_call.1} parent=1 // loop_exit
      _
    %1344 = vsyncpa [#allocation3], 1
    %s1345 = scalar_lea.sflag [#allocation3], 1
    %1346 = vsyncpa %s1345, 1

</llo_original>
